<compile_context>
chip_gen: v6e
topology: v6e:2x2x1
jax: 0.10.0
libtpu: 0.0.40
codegen_flags: <defaults>
</compile_context>

<pallas_src>
import math

import jax
import jax.numpy as jnp
from jax import lax
from jax.experimental import pallas as pl
from jax.experimental.pallas import tpu as pltpu


_MASK_NEG = -1e30  # finite "minus infinity" used on the flash path (avoids NaNs)


# ---------------------------------------------------------------------------
# Tiling helper
# ---------------------------------------------------------------------------
def _pick_tile(dim, target):
    """Largest tile <= target that divides `dim` and is a multiple of 8 (else full dim)."""
    if dim <= target:
        return dim
    t = (target // 8) * 8
    while t >= 8:
        if dim % t == 0:
            return t
        t -= 8
    # NOTE: falls back to the full dim for awkward sizes; acceptable for the
    # shapes exercised here (see review concern).
    return dim


# ---------------------------------------------------------------------------
# Q/K/V projection kernels (tiled over M = T*B, weights resident)
# ---------------------------------------------------------------------------
def _make_qkv_proj_kernel(use_bf16):
    mm = jnp.bfloat16 if use_bf16 else jnp.float32

    def kernel(q_ref, k_ref, v_ref, wq_ref, wk_ref, wv_ref,
               bq_ref, bk_ref, bv_ref, qo_ref, ko_ref, vo_ref):
        qo_ref[...] = (jnp.dot(q_ref[...].astype(mm), wq_ref[...].astype(mm),
                               preferred_element_type=jnp.float32)
                       + bq_ref[...]).astype(qo_ref.dtype)
        ko_ref[...] = (jnp.dot(k_ref[...].astype(mm), wk_ref[...].astype(mm),
                               preferred_element_type=jnp.float32)
                       + bk_ref[...]).astype(ko_ref.dtype)
        vo_ref[...] = (jnp.dot(v_ref[...].astype(mm), wv_ref[...].astype(mm),
                               preferred_element_type=jnp.float32)
                       + bv_ref[...]).astype(vo_ref.dtype)

    return kernel


def qkv_projection(q, k, v, wq, wk, wv, bq, bk, bv, *, use_bf16=False, tm_target=512):
    """q/k/v: (M, E).  Weights pre-transposed (E_in, E_out).  Biases (1, E_out)."""
    M, E = q.shape
    Eo = wq.shape[1]
    tm = _pick_tile(M, tm_target)
    x_spec = pl.BlockSpec((tm, E), lambda i: (i, 0))
    w_spec = pl.BlockSpec((E, Eo), lambda i: (0, 0))      # resident across the grid
    b_spec = pl.BlockSpec((1, Eo), lambda i: (0, 0))
    o_spec = pl.BlockSpec((tm, Eo), lambda i: (i, 0))
    out_sds = jax.ShapeDtypeStruct((M, Eo), q.dtype)
    return pl.pallas_call(
        _make_qkv_proj_kernel(use_bf16),
        out_shape=(out_sds, out_sds, out_sds),
        grid=(M // tm,),
        in_specs=[x_spec, x_spec, x_spec, w_spec, w_spec, w_spec,
                  b_spec, b_spec, b_spec],
        out_specs=(o_spec, o_spec, o_spec),
        compiler_params=pltpu.CompilerParams(dimension_semantics=("parallel",)),
    )(q, k, v, wq, wk, wv, bq, bk, bv)


def _make_qkv_proj_selfattn_kernel(embed_dim, use_bf16):
    mm = jnp.bfloat16 if use_bf16 else jnp.float32
    E = embed_dim

    def kernel(x_ref, w_ref, b_ref, qo_ref, ko_ref, vo_ref):
        y = jnp.dot(x_ref[...].astype(mm), w_ref[...].astype(mm),
                    preferred_element_type=jnp.float32) + b_ref[...]
        qo_ref[...] = y[:, 0:E].astype(qo_ref.dtype)
        ko_ref[...] = y[:, E:2 * E].astype(ko_ref.dtype)
        vo_ref[...] = y[:, 2 * E:3 * E].astype(vo_ref.dtype)

    return kernel


def qkv_projection_selfattn(x, w_qkv, b_qkv, embed_dim, *, use_bf16=False, tm_target=512):
    """Self-attention fast path: x DMA'd once, one (E, 3E) wide dot."""
    M, E = x.shape
    tm = _pick_tile(M, tm_target)
    out_sds = jax.ShapeDtypeStruct((M, embed_dim), x.dtype)
    o_spec = pl.BlockSpec((tm, embed_dim), lambda i: (i, 0))
    return pl.pallas_call(
        _make_qkv_proj_selfattn_kernel(embed_dim, use_bf16),
        out_shape=(out_sds, out_sds, out_sds),
        grid=(M // tm,),
        in_specs=[pl.BlockSpec((tm, E), lambda i: (i, 0)),
                  pl.BlockSpec((E, 3 * embed_dim), lambda i: (0, 0)),
                  pl.BlockSpec((1, 3 * embed_dim), lambda i: (0, 0))],
        out_specs=(o_spec, o_spec, o_spec),
        compiler_params=pltpu.CompilerParams(dimension_semantics=("parallel",)),
    )(x, w_qkv, b_qkv)


# ---------------------------------------------------------------------------
# Attention kernel, weights-producing path (K/V resident per batch, heads
# looped in-kernel, W_o fused into the epilogue).
# ---------------------------------------------------------------------------
def _make_attn_weights_kernel(num_heads, head_dim, with_mask, use_bf16):
    mm = jnp.bfloat16 if use_bf16 else jnp.float32

    def kernel(*refs):
        if with_mask:
            q_ref, k_ref, v_ref, m_ref, wo_ref, bo_ref, o_ref, attn_ref = refs
        else:
            q_ref, k_ref, v_ref, wo_ref, bo_ref, o_ref, attn_ref = refs
            m_ref = None

        q = q_ref[...]                      # (tq, E)  (scale already folded into w_q)
        k = k_ref[...]                      # (T, E)
        v = v_ref[...]                      # (T, E)
        wo = wo_ref[...]                    # (E, E)
        tq = q.shape[0]
        E = wo.shape[1]
        if with_mask:
            masked = m_ref[...] != 0.0      # (tq, T) bool, True => masked out

        acc = jnp.zeros((tq, E), jnp.float32)
        for h in range(num_heads):
            sl = slice(h * head_dim, (h + 1) * head_dim)
            s = lax.dot_general(q[:, sl].astype(mm), k[:, sl].astype(mm),
                                dimension_numbers=(((1,), (1,)), ((), ())),
                                preferred_element_type=jnp.float32)       # (tq, T)
            if with_mask:
                # -inf (not a finite stand-in) to match torch masked_fill exactly;
                # fully-masked rows therefore produce NaN, same as the reference.
                s = jnp.where(masked, -jnp.inf, s)
            m = jnp.max(s, axis=-1, keepdims=True)
            e = jnp.exp(s - m)
            den = jnp.sum(e, axis=-1, keepdims=True)
            p = e * pl.reciprocal(den, approx=False)                      # (tq, T)
            attn_ref[h] = p.astype(attn_ref.dtype)
            head_out = jnp.dot(p.astype(mm), v[:, sl].astype(mm),
                               preferred_element_type=jnp.float32)        # (tq, Dh)
            # Distribute W_o over heads:  cat(head_outs) @ W_o == sum_h out_h @ W_o[h]
            acc = acc + jnp.dot(head_out.astype(mm), wo[sl, :].astype(mm),
                                preferred_element_type=jnp.float32)
        o_ref[...] = (acc + bo_ref[...]).astype(o_ref.dtype)

    return kernel


def mha_attention_with_weights(qb, kb, vb, w_o, b_o, num_heads, mask=None, *,
                               use_bf16=False, tq_target=256,
                               weights_dtype=jnp.float32):
    """qb/kb/vb: (B, T, E).  mask: optional (B, T, T) f32 (nonzero = masked).

    Returns (out (B, T, E) with W_o applied, attn (B, H, T, T))."""
    B, T, E = qb.shape
    head_dim = E // num_heads
    tq = _pick_tile(T, tq_target)
    grid = (B, T // tq)

    in_specs = [pl.BlockSpec((None, tq, E), lambda b, i: (b, i, 0)),
                pl.BlockSpec((None, T, E), lambda b, i: (b, 0, 0)),
                pl.BlockSpec((None, T, E), lambda b, i: (b, 0, 0))]
    args = [qb, kb, vb]
    if mask is not None:
        in_specs.append(pl.BlockSpec((None, tq, T), lambda b, i: (b, i, 0)))
        args.append(mask)
    in_specs += [pl.BlockSpec((E, E), lambda b, i: (0, 0)),
                 pl.BlockSpec((1, E), lambda b, i: (0, 0))]
    args += [w_o, b_o]

    out_specs = (pl.BlockSpec((None, tq, E), lambda b, i: (b, i, 0)),
                 pl.BlockSpec((None, num_heads, tq, T), lambda b, i: (b, 0, i, 0)))
    out_shapes = (jax.ShapeDtypeStruct((B, T, E), qb.dtype),
                  jax.ShapeDtypeStruct((B, num_heads, T, T), weights_dtype))

    out, attn = pl.pallas_call(
        _make_attn_weights_kernel(num_heads, head_dim, mask is not None, use_bf16),
        out_shape=out_shapes,
        grid=grid,
        in_specs=in_specs,
        out_specs=out_specs,
        compiler_params=pltpu.CompilerParams(
            dimension_semantics=("parallel", "parallel")),
    )(*args)
    return out, attn


# ---------------------------------------------------------------------------
# Flash-style attention (no weights output): KV-tiled online softmax,
# W_o fused into the epilogue.  VMEM stays O(tq*tk) per step.
# ---------------------------------------------------------------------------
def _make_attn_flash_kernel(num_heads, head_dim, with_mask, use_bf16):
    mm = jnp.bfloat16 if use_bf16 else jnp.float32

    def kernel(*refs):
        if with_mask:
            q_ref, k_ref, v_ref, m_ref, wo_ref, bo_ref, o_ref, m_sc, l_sc, acc_sc = refs
        else:
            q_ref, k_ref, v_ref, wo_ref, bo_ref, o_ref, m_sc, l_sc, acc_sc = refs
            m_ref = None

        j = pl.program_id(2)

        @pl.when(j == 0)
        def _():
            m_sc[...] = jnp.full(m_sc.shape, _MASK_NEG, m_sc.dtype)
            l_sc[...] = jnp.zeros(l_sc.shape, l_sc.dtype)
            acc_sc[...] = jnp.zeros(acc_sc.shape, acc_sc.dtype)

        q = q_ref[...]                      # (tq, E)
        k = k_ref[...]                      # (tk, E)
        v = v_ref[...]                      # (tk, E)
        if with_mask:
            masked = m_ref[...] != 0.0      # (tq, tk)

        for h in range(num_heads):
            sl = slice(h * head_dim, (h + 1) * head_dim)
            s = lax.dot_general(q[:, sl].astype(mm), k[:, sl].astype(mm),
                                dimension_numbers=(((1,), (1,)), ((), ())),
                                preferred_element_type=jnp.float32)      # (tq, tk)
            if with_mask:
                s = jnp.where(masked, _MASK_NEG, s)
            m_prev = m_sc[h]                                              # (tq, 1)
            m_new = jnp.maximum(m_prev, jnp.max(s, axis=-1, keepdims=True))
            alpha = jnp.exp(m_prev - m_new)
            p = jnp.exp(s - m_new)
            l_sc[h] = alpha * l_sc[h] + jnp.sum(p, axis=-1, keepdims=True)
            acc_sc[h] = alpha * acc_sc[h] + jnp.dot(
                p.astype(mm), v[:, sl].astype(mm),
                preferred_element_type=jnp.float32)                       # (tq, Dh)
            m_sc[h] = m_new

        @pl.when(j == pl.num_programs(2) - 1)
        def _():
            wo = wo_ref[...]
            tq = q_ref.shape[0]
            E = wo.shape[1]
            out = jnp.zeros((tq, E), jnp.float32)
            for h in range(num_heads):
                sl = slice(h * head_dim, (h + 1) * head_dim)
                head_out = acc_sc[h] * pl.reciprocal(l_sc[h], approx=False)
                out = out + jnp.dot(head_out.astype(mm), wo[sl, :].astype(mm),
                                    preferred_element_type=jnp.float32)
            o_ref[...] = (out + bo_ref[...]).astype(o_ref.dtype)

    return kernel


def mha_flash_attention(qb, kb, vb, w_o, b_o, num_heads, mask=None, *,
                        use_bf16=False, tq_target=256, tk_target=512):
    """qb/kb/vb: (B, T, E).  Returns out (B, T, E) with W_o applied (no weights)."""
    B, T, E = qb.shape
    head_dim = E // num_heads
    tq = _pick_tile(T, tq_target)
    tk = _pick_tile(T, tk_target)
    grid = (B, T // tq, T // tk)

    in_specs = [pl.BlockSpec((None, tq, E), lambda b, i, j: (b, i, 0)),
                pl.BlockSpec((None, tk, E), lambda b, i, j: (b, j, 0)),
                pl.BlockSpec((None, tk, E), lambda b, i, j: (b, j, 0))]
    args = [qb, kb, vb]
    if mask is not None:
        in_specs.append(pl.BlockSpec((None, tq, tk), lambda b, i, j: (b, i, j)))
        args.append(mask)
    in_specs += [pl.BlockSpec((E, E), lambda b, i, j: (0, 0)),
                 pl.BlockSpec((1, E), lambda b, i, j: (0, 0))]
    args += [w_o, b_o]

    return pl.pallas_call(
        _make_attn_flash_kernel(num_heads, head_dim, mask is not None, use_bf16),
        out_shape=jax.ShapeDtypeStruct((B, T, E), qb.dtype),
        grid=grid,
        in_specs=in_specs,
        out_specs=pl.BlockSpec((None, tq, E), lambda b, i, j: (b, i, 0)),
        scratch_shapes=[pltpu.VMEM((num_heads, tq, 1), jnp.float32),
                        pltpu.VMEM((num_heads, tq, 1), jnp.float32),
                        pltpu.VMEM((num_heads, tq, head_dim), jnp.float32)],
        compiler_params=pltpu.CompilerParams(
            dimension_semantics=("parallel", "parallel", "arbitrary")),
    )(*args)


# ---------------------------------------------------------------------------
# MultiheadAttention module (forward pass only)
# ---------------------------------------------------------------------------
class MultiheadAttention:
    def __init__(self, embed_dim, num_heads, key, use_bf16_matmul=False):
        assert embed_dim % num_heads == 0
        self.embed_dim = embed_dim
        self.num_heads = num_heads
        self.head_dim = embed_dim // num_heads
        self.use_bf16_matmul = use_bf16_matmul

        # xavier_uniform_ init; weights stored PRE-TRANSPOSED as (in, out).
        bound = math.sqrt(6.0 / (embed_dim + embed_dim))
        ks = jax.random.split(key, 4)
        init = lambda kk: jax.random.uniform(
            kk, (embed_dim, embed_dim), jnp.float32, -bound, bound)
        self.w_q, self.w_k, self.w_v, self.w_o = (init(kk) for kk in ks)
        zb = jnp.zeros((1, embed_dim), jnp.float32)
        self.b_q = self.b_k = self.b_v = self.b_o = zb

        # 1/sqrt(Dh) folded into the Q projection (kernel-side scale-free).
        scale = 1.0 / math.sqrt(self.head_dim)
        self.w_q_scaled = self.w_q * scale
        self.b_q_scaled = self.b_q * scale
        # Concatenated weights for the self-attention fast path.
        self.w_qkv_scaled = jnp.concatenate(
            [self.w_q_scaled, self.w_k, self.w_v], axis=1)       # (E, 3E)
        self.b_qkv_scaled = jnp.concatenate(
            [self.b_q_scaled, self.b_k, self.b_v], axis=1)       # (1, 3E)

    def __call__(self, q, k, v, mask=None, need_weights=True, use_bf16=None):
        # q, k, v: (T, B, E) sequence-first, as in the PyTorch module.
        if use_bf16 is None:
            use_bf16 = self.use_bf16_matmul
        T, B, E = q.shape
        M = T * B

        if (q is k) and (k is v):
            qp, kp, vp = qkv_projection_selfattn(
                q.reshape(M, E), self.w_qkv_scaled, self.b_qkv_scaled, E,
                use_bf16=use_bf16)
        else:
            qp, kp, vp = qkv_projection(
                q.reshape(M, E), k.reshape(M, E), v.reshape(M, E),
                self.w_q_scaled, self.w_k, self.w_v,
                self.b_q_scaled, self.b_k, self.b_v,
                use_bf16=use_bf16)

        # (M, E) == (T, B, E) -> (B, T, E) layout for per-batch attention tiles.
        to_bte = lambda x: x.reshape(T, B, E).transpose(1, 0, 2)
        qb, kb, vb = to_bte(qp), to_bte(kp), to_bte(vp)

        mask_f = None
        if mask is not None:
            # boolean mask, True => masked (-inf), broadcast over heads like the
            # PyTorch module's mask.unsqueeze(1).
            mask_f = jnp.broadcast_to(mask, (B, T, T)).astype(jnp.float32)

        if need_weights:
            out_bte, attn_w = mha_attention_with_weights(
                qb, kb, vb, self.w_o, self.b_o, self.num_heads, mask_f,
                use_bf16=use_bf16)
        else:
            out_bte = mha_flash_attention(
                qb, kb, vb, self.w_o, self.b_o, self.num_heads, mask_f,
                use_bf16=use_bf16)
            attn_w = None

        out = out_bte.transpose(1, 0, 2)     # (T, B, E)
        return out, attn_w


# ---------------------------------------------------------------------------
# Pure-JAX reference for sanity checking
# ---------------------------------------------------------------------------
def reference_forward(mha, q, k, v, mask=None):
    T, B, E = q.shape
    H, Dh = mha.num_heads, mha.head_dim
    lin = lambda x, w, b: x @ w + b          # weights are (in, out)
    qp = lin(q.reshape(-1, E), mha.w_q, mha.b_q).reshape(T, B, H, Dh).transpose(1, 2, 0, 3)
    kp = lin(k.reshape(-1, E), mha.w_k, mha.b_k).reshape(T, B, H, Dh).transpose(1, 2, 0, 3)
    vp = lin(v.reshape(-1, E), mha.w_v, mha.b_v).reshape(T, B, H, Dh).transpose(1, 2, 0, 3)
    logits = jnp.einsum("bhqd,bhkd->bhqk", qp, kp) / jnp.sqrt(jnp.float32(Dh))
    if mask is not None:
        logits = jnp.where(jnp.broadcast_to(mask, (B, T, T))[:, None, :, :],
                           -jnp.inf, logits)
    attn = jax.nn.softmax(logits, axis=-1)
    oh = jnp.einsum("bhqk,bhkd->bhqd", attn, vp)
    oc = oh.transpose(2, 0, 1, 3).reshape(T * B, E)
    out = (oc @ mha.w_o + mha.b_o).reshape(T, B, E)
    return out, attn


if __name__ == "__main__":
    T, B, E, H = 8, 2, 32, 4   # seq=8, batch=2, embed_dim=32, num_heads=4

    root = jax.random.PRNGKey(0)
    k_param, k_q, k_k, k_v = jax.random.split(root, 4)

    mha = MultiheadAttention(E, H, k_param)

    q = jax.random.normal(k_q, (T, B, E), jnp.float32)
    k = jax.random.normal(k_k, (T, B, E), jnp.float32)
    v = jax.random.normal(k_v, (T, B, E), jnp.float32)

    # --- 1. unmasked, weights-producing path ---
    out, attn_w = mha(q, k, v)
    jax.block_until_ready(out)
    jax.block_until_ready(attn_w)
    ref_out, ref_attn = reference_forward(mha, q, k, v)
    assert out.shape == (T, B, E)
    assert attn_w.shape == (B, H, T, T)
    assert jnp.allclose(out, ref_out, atol=1e-4, rtol=1e-4)
    assert jnp.allclose(attn_w, ref_attn, atol=1e-4, rtol=1e-4)

    # --- 2. causal mask, weights-producing path ---
    causal = jnp.arange(T)[None, :] > jnp.arange(T)[:, None]          # (T, T) bool
    mask = jnp.broadcast_to(causal, (B, T, T))
    out_m, attn_m = mha(q, k, v, mask=mask)
    jax.block_until_ready(out_m)
    ref_out_m, ref_attn_m = reference_forward(mha, q, k, v, mask=mask)
    assert jnp.allclose(out_m, ref_out_m, atol=1e-4, rtol=1e-4)
    assert jnp.allclose(attn_m, ref_attn_m, atol=1e-4, rtol=1e-4)

    # --- 3. flash path (need_weights=False), unmasked ---
    out_f, none_w = mha(q, k, v, need_weights=False)
    jax.block_until_ready(out_f)
    assert none_w is None
    assert jnp.allclose(out_f, ref_out, atol=1e-4, rtol=1e-4)

    # --- 4. flash path, masked ---
    out_fm, _ = mha(q, k, v, mask=mask, need_weights=False)
    jax.block_until_ready(out_fm)
    assert jnp.allclose(out_fm, ref_out_m, atol=1e-4, rtol=1e-4)

    # --- 5. self-attention fast path (single concatenated projection) ---
    out_s, attn_s = mha(q, q, q)
    jax.block_until_ready(out_s)
    ref_out_s, ref_attn_s = reference_forward(mha, q, q, q)
    assert jnp.allclose(out_s, ref_out_s, atol=1e-4, rtol=1e-4)
    assert jnp.allclose(attn_s, ref_attn_s, atol=1e-4, rtol=1e-4)

    # --- 6. bf16 MXU-feeding path (softmax stays f32): looser tolerance ---
    out_b, _ = mha(q, k, v, use_bf16=True)
    jax.block_until_ready(out_b)
    assert jnp.allclose(out_b, ref_out, atol=5e-2, rtol=5e-2)

    print("KERNEL_OK")
</pallas_src>

<mosaic_0001>
module attributes {stable_mosaic.version = 11 : i64} {
  func.func @kernel(%arg0: i32, %arg1: memref<16x32xf32, #tpu.memory_space<vmem>>, %arg2: memref<16x32xf32, #tpu.memory_space<vmem>>, %arg3: memref<16x32xf32, #tpu.memory_space<vmem>>, %arg4: memref<32x32xf32, #tpu.memory_space<vmem>>, %arg5: memref<32x32xf32, #tpu.memory_space<vmem>>, %arg6: memref<32x32xf32, #tpu.memory_space<vmem>>, %arg7: memref<1x32xf32, #tpu.memory_space<vmem>>, %arg8: memref<1x32xf32, #tpu.memory_space<vmem>>, %arg9: memref<1x32xf32, #tpu.memory_space<vmem>>, %arg10: memref<16x32xf32, #tpu.memory_space<vmem>>, %arg11: memref<16x32xf32, #tpu.memory_space<vmem>>, %arg12: memref<16x32xf32, #tpu.memory_space<vmem>>) attributes {dimension_semantics = [#tpu.dimension_semantics<parallel>], iteration_bounds = array<i64: 1>, scalar_prefetch = 0 : i64, scratch_operands = 0 : i64, tpu.core_type = #tpu.core_type<tc>, window_params = [{transform_indices = @transform_0, window_bounds = array<i64: 16, 32>}, {transform_indices = @transform_1, window_bounds = array<i64: 16, 32>}, {transform_indices = @transform_2, window_bounds = array<i64: 16, 32>}, {pipeline_mode = #tpu.pipeline_mode<synchronous>, transform_indices = @transform_3, window_bounds = array<i64: 32, 32>}, {pipeline_mode = #tpu.pipeline_mode<synchronous>, transform_indices = @transform_4, window_bounds = array<i64: 32, 32>}, {pipeline_mode = #tpu.pipeline_mode<synchronous>, transform_indices = @transform_5, window_bounds = array<i64: 32, 32>}, {pipeline_mode = #tpu.pipeline_mode<synchronous>, transform_indices = @transform_6, window_bounds = array<i64: 1, 32>}, {pipeline_mode = #tpu.pipeline_mode<synchronous>, transform_indices = @transform_7, window_bounds = array<i64: 1, 32>}, {pipeline_mode = #tpu.pipeline_mode<synchronous>, transform_indices = @transform_8, window_bounds = array<i64: 1, 32>}, {transform_indices = @transform_9, window_bounds = array<i64: 16, 32>}, {transform_indices = @transform_10, window_bounds = array<i64: 16, 32>}, {transform_indices = @transform_11, window_bounds = array<i64: 16, 32>}]} {
    %c0 = arith.constant 0 : index
    %c0_0 = arith.constant 0 : index
    %0 = vector.load %arg1[%c0, %c0_0] : memref<16x32xf32, #tpu.memory_space<vmem>>, vector<16x32xf32>
    %c0_1 = arith.constant 0 : index
    %c0_2 = arith.constant 0 : index
    %1 = vector.load %arg4[%c0_1, %c0_2] : memref<32x32xf32, #tpu.memory_space<vmem>>, vector<32x32xf32>
    %cst = arith.constant dense<0.000000e+00> : vector<16x32xf32>
    %2 = tpu.matmul %0, %1, %cst {dimension_numbers = #tpu.dot_dimension_numbers<[1], [0], [0], [1], [0, 0, 1, 1], [], []>} : vector<16x32xf32>, vector<32x32xf32>, vector<16x32xf32> -> vector<16x32xf32>
    %c0_3 = arith.constant 0 : index
    %c0_4 = arith.constant 0 : index
    %3 = vector.load %arg7[%c0_3, %c0_4] : memref<1x32xf32, #tpu.memory_space<vmem>>, vector<1x32xf32>
    %4 = vector.broadcast %3 : vector<1x32xf32> to vector<16x32xf32>
    %5 = arith.addf %2, %4 : vector<16x32xf32>
    %c0_5 = arith.constant 0 : index
    %c0_6 = arith.constant 0 : index
    %6 = vector.load %arg10[%c0_5, %c0_6] : memref<16x32xf32, #tpu.memory_space<vmem>>, vector<16x32xf32>
    tpu.vector_store %arg10[%c0_5, %c0_6], %5 {strides = array<i32>} : memref<16x32xf32, #tpu.memory_space<vmem>>, vector<16x32xf32>,
    %c0_7 = arith.constant 0 : index
    %c0_8 = arith.constant 0 : index
    %7 = vector.load %arg2[%c0_7, %c0_8] : memref<16x32xf32, #tpu.memory_space<vmem>>, vector<16x32xf32>
    %c0_9 = arith.constant 0 : index
    %c0_10 = arith.constant 0 : index
    %8 = vector.load %arg5[%c0_9, %c0_10] : memref<32x32xf32, #tpu.memory_space<vmem>>, vector<32x32xf32>
    %cst_11 = arith.constant dense<0.000000e+00> : vector<16x32xf32>
    %9 = tpu.matmul %7, %8, %cst_11 {dimension_numbers = #tpu.dot_dimension_numbers<[1], [0], [0], [1], [0, 0, 1, 1], [], []>} : vector<16x32xf32>, vector<32x32xf32>, vector<16x32xf32> -> vector<16x32xf32>
    %c0_12 = arith.constant 0 : index
    %c0_13 = arith.constant 0 : index
    %10 = vector.load %arg8[%c0_12, %c0_13] : memref<1x32xf32, #tpu.memory_space<vmem>>, vector<1x32xf32>
    %11 = vector.broadcast %10 : vector<1x32xf32> to vector<16x32xf32>
    %12 = arith.addf %9, %11 : vector<16x32xf32>
    %c0_14 = arith.constant 0 : index
    %c0_15 = arith.constant 0 : index
    %13 = vector.load %arg11[%c0_14, %c0_15] : memref<16x32xf32, #tpu.memory_space<vmem>>, vector<16x32xf32>
    tpu.vector_store %arg11[%c0_14, %c0_15], %12 {strides = array<i32>} : memref<16x32xf32, #tpu.memory_space<vmem>>, vector<16x32xf32>,
    %c0_16 = arith.constant 0 : index
    %c0_17 = arith.constant 0 : index
    %14 = vector.load %arg3[%c0_16, %c0_17] : memref<16x32xf32, #tpu.memory_space<vmem>>, vector<16x32xf32>
    %c0_18 = arith.constant 0 : index
    %c0_19 = arith.constant 0 : index
    %15 = vector.load %arg6[%c0_18, %c0_19] : memref<32x32xf32, #tpu.memory_space<vmem>>, vector<32x32xf32>
    %cst_20 = arith.constant dense<0.000000e+00> : vector<16x32xf32>
    %16 = tpu.matmul %14, %15, %cst_20 {dimension_numbers = #tpu.dot_dimension_numbers<[1], [0], [0], [1], [0, 0, 1, 1], [], []>} : vector<16x32xf32>, vector<32x32xf32>, vector<16x32xf32> -> vector<16x32xf32>
    %c0_21 = arith.constant 0 : index
    %c0_22 = arith.constant 0 : index
    %17 = vector.load %arg9[%c0_21, %c0_22] : memref<1x32xf32, #tpu.memory_space<vmem>>, vector<1x32xf32>
    %18 = vector.broadcast %17 : vector<1x32xf32> to vector<16x32xf32>
    %19 = arith.addf %16, %18 : vector<16x32xf32>
    %c0_23 = arith.constant 0 : index
    %c0_24 = arith.constant 0 : index
    %20 = vector.load %arg12[%c0_23, %c0_24] : memref<16x32xf32, #tpu.memory_space<vmem>>, vector<16x32xf32>
    tpu.vector_store %arg12[%c0_23, %c0_24], %19 {strides = array<i32>} : memref<16x32xf32, #tpu.memory_space<vmem>>, vector<16x32xf32>,
    return
  }
  func.func @transform_0(%arg0: i32) -> (i32, i32) {
    %c0_i32 = arith.constant 0 : i32
    %c0_i32_0 = arith.constant 0 : i32
    return %arg0, %c0_i32 : i32, i32
  }
  func.func @transform_1(%arg0: i32) -> (i32, i32) {
    %c0_i32 = arith.constant 0 : i32
    %c0_i32_0 = arith.constant 0 : i32
    return %arg0, %c0_i32 : i32, i32
  }
  func.func @transform_2(%arg0: i32) -> (i32, i32) {
    %c0_i32 = arith.constant 0 : i32
    %c0_i32_0 = arith.constant 0 : i32
    return %arg0, %c0_i32 : i32, i32
  }
  func.func @transform_3(%arg0: i32) -> (i32, i32) {
    %c0_i32 = arith.constant 0 : i32
    %c0_i32_0 = arith.constant 0 : i32
    %c0_i32_1 = arith.constant 0 : i32
    return %c0_i32, %c0_i32_0 : i32, i32
  }
  func.func @transform_4(%arg0: i32) -> (i32, i32) {
    %c0_i32 = arith.constant 0 : i32
    %c0_i32_0 = arith.constant 0 : i32
    %c0_i32_1 = arith.constant 0 : i32
    return %c0_i32, %c0_i32_0 : i32, i32
  }
  func.func @transform_5(%arg0: i32) -> (i32, i32) {
    %c0_i32 = arith.constant 0 : i32
    %c0_i32_0 = arith.constant 0 : i32
    %c0_i32_1 = arith.constant 0 : i32
    return %c0_i32, %c0_i32_0 : i32, i32
  }
  func.func @transform_6(%arg0: i32) -> (i32, i32) {
    %c0_i32 = arith.constant 0 : i32
    %c0_i32_0 = arith.constant 0 : i32
    %c0_i32_1 = arith.constant 0 : i32
    return %c0_i32, %c0_i32_0 : i32, i32
  }
  func.func @transform_7(%arg0: i32) -> (i32, i32) {
    %c0_i32 = arith.constant 0 : i32
    %c0_i32_0 = arith.constant 0 : i32
    %c0_i32_1 = arith.constant 0 : i32
    return %c0_i32, %c0_i32_0 : i32, i32
  }
  func.func @transform_8(%arg0: i32) -> (i32, i32) {
    %c0_i32 = arith.constant 0 : i32
    %c0_i32_0 = arith.constant 0 : i32
    %c0_i32_1 = arith.constant 0 : i32
    return %c0_i32, %c0_i32_0 : i32, i32
  }
  func.func @transform_9(%arg0: i32) -> (i32, i32) {
    %c0_i32 = arith.constant 0 : i32
    %c0_i32_0 = arith.constant 0 : i32
    return %arg0, %c0_i32 : i32, i32
  }
  func.func @transform_10(%arg0: i32) -> (i32, i32) {
    %c0_i32 = arith.constant 0 : i32
    %c0_i32_0 = arith.constant 0 : i32
    return %arg0, %c0_i32 : i32, i32
  }
  func.func @transform_11(%arg0: i32) -> (i32, i32) {
    %c0_i32 = arith.constant 0 : i32
    %c0_i32_0 = arith.constant 0 : i32
    return %arg0, %c0_i32 : i32, i32
  }
}

</mosaic_0001>

<llo_original>
// kernel: tpu_custom_call.1
$region0: #{tpu_custom_call.1}
  #allocation0 [shape = 'u32[]', space=smem, size = 0x4, offset = 0x4, fixed_abs, tag = 'smem constant byte address 0x4 - core index']
  #allocation1 [shape = 'u32[144,128]{1,0:T(1,128)}', space=vmem, size = 0x12000, scoped, tag = 'internal scratch']
  %s0 = inlined_call_operand.hbm [shape: f32[16,32], index: 0, kind: input, shape index: {}]
  %s1 = inlined_call_operand.hbm [shape: f32[16,32], index: 1, kind: input, shape index: {}]
  %s2 = inlined_call_operand.hbm [shape: f32[16,32], index: 2, kind: input, shape index: {}]
  %s3 = inlined_call_operand.hbm [shape: f32[32,32], index: 3, kind: input, shape index: {}]
  %s4 = inlined_call_operand.hbm [shape: f32[32,32], index: 4, kind: input, shape index: {}]
  %s5 = inlined_call_operand.hbm [shape: f32[32,32], index: 5, kind: input, shape index: {}]
  %s6 = inlined_call_operand.vmem [shape: f32[1,32], index: 6, kind: input, shape index: {}]
  %s7 = inlined_call_operand.vmem [shape: f32[1,32], index: 7, kind: input, shape index: {}]
  %s8 = inlined_call_operand.vmem [shape: f32[1,32], index: 8, kind: input, shape index: {}]
  %s9 = inlined_call_operand.hbm [shape: f32[16,32], index: 9, kind: output, shape index: {0}]
  %s10 = inlined_call_operand.hbm [shape: f32[16,32], index: 10, kind: output, shape index: {1}]
  %s11 = inlined_call_operand.hbm [shape: f32[16,32], index: 11, kind: output, shape index: {2}]
  %12 = xla_tuple %s9, %s10, %s11
  %s13 = sld [smem:[#allocation0]]
  $region86: #{tpu_custom_call.1} parent=0
    _
  %s15 = ssub.s32 1, %s13
  %s16 = scalar_select 0, %s15, %s13
  $region1: #{tpu_custom_call.1} parent=0
    #allocation2 [shape = 'u8[8192]{0}', space=vmem, size = 0x2000, scoped, tag = 'input window, operand 0, single buffered']
    #allocation3 [shape = 's32[1]{0}', space=sflag, size = 0x4, scoped, tag = 'scoped memory for tpu_custom_call.1']
    #allocation4 [shape = 's32[1]{0}', space=sflag, size = 0x4, scoped, tag = 'scoped memory for tpu_custom_call.1']
    #allocation5 [shape = 'u8[8192]{0}', space=vmem, size = 0x2000, scoped, tag = 'input window, operand 1, single buffered']
    #allocation6 [shape = 's32[1]{0}', space=sflag, size = 0x4, scoped, tag = 'scoped memory for tpu_custom_call.1']
    #allocation7 [shape = 'u8[8192]{0}', space=vmem, size = 0x2000, scoped, tag = 'input window, operand 2, single buffered']
    #allocation8 [shape = 'u8[16384]{0}', space=vmem, size = 0x4000, scoped, tag = 'input window, operand 3, single buffered']
    #allocation9 [shape = 's32[1]{0}', space=sflag, size = 0x4, scoped, tag = 'scoped memory for tpu_custom_call.1']
    #allocation10 [shape = 'u8[16384]{0}', space=vmem, size = 0x4000, scoped, tag = 'input window, operand 4, single buffered']
    #allocation11 [shape = 'u8[16384]{0}', space=vmem, size = 0x4000, scoped, tag = 'input window, operand 5, single buffered']
    #allocation12 [shape = 's32[1]{0}', space=sflag, size = 0x4, scoped, tag = 'scoped memory for tpu_custom_call.1']
    #allocation13 [shape = 'u8[8192]{0}', space=vmem, size = 0x2000, scoped, tag = 'output window, operand 0, single buffered']
    #allocation14 [shape = 'u8[8192]{0}', space=vmem, size = 0x2000, scoped, tag = 'output window, operand 1, single buffered']
    #allocation15 [shape = 's32[1]{0}', space=sflag, size = 0x4, scoped, tag = 'scoped memory for tpu_custom_call.1']
    #allocation16 [shape = 'u8[8192]{0}', space=vmem, size = 0x2000, scoped, tag = 'output window, operand 2, single buffered']
    %17 = vsyncpa [#allocation3], 0
    %18 = vsyncpa [#allocation6], 0
    %19 = vsyncpa [#allocation9], 0
    %20 = vsyncpa [#allocation12], 0
    %21 = vsyncpa [#allocation4], 0
    %22 = vsyncpa [#allocation15], 0
    // Predicated region
    $region2: #{tpu_custom_call.1} parent=1 // pred_check
      _
    $region3: #{tpu_custom_call.1} parent=1 // pred_check_branch
      %24 = sbr.rel (0) target = $region5
    $region4: #{tpu_custom_call.1} parent=1 // pred_region
      %s26 = ssub.s32 256, 256
      %27 = vsyncadd [#allocation3], %s26
      %s28 = sshll.u32 [#allocation2], 4
      %s29 = int_to_ptr.vmem [resolvable:$true] %s28
      %34 = dma.hbm_to_vmem [thread:$0]  %s0, 256, %s29, [#allocation3], 128, 128, 8
    $region5: #{tpu_custom_call.1} parent=1 // pred_fallthru
      _
    // Predicated region
    $region6: #{tpu_custom_call.1} parent=1 // pred_check
      _
    $region7: #{tpu_custom_call.1} parent=1 // pred_check_branch
      %36 = sbr.rel (0) target = $region9
    $region8: #{tpu_custom_call.1} parent=1 // pred_region
      %s38 = ssub.s32 256, 256
      %39 = vsyncadd [#allocation6], %s38
      %s40 = sshll.u32 [#allocation5], 4
      %s41 = int_to_ptr.vmem [resolvable:$true] %s40
      %46 = dma.hbm_to_vmem [thread:$0]  %s1, 256, %s41, [#allocation6], 128, 128, 8
    $region9: #{tpu_custom_call.1} parent=1 // pred_fallthru
      _
    // Predicated region
    $region10: #{tpu_custom_call.1} parent=1 // pred_check
      _
    $region11: #{tpu_custom_call.1} parent=1 // pred_check_branch
      %48 = sbr.rel (0) target = $region13
    $region12: #{tpu_custom_call.1} parent=1 // pred_region
      %s50 = ssub.s32 256, 256
      %51 = vsyncadd [#allocation6], %s50
      %s52 = sshll.u32 [#allocation7], 4
      %s53 = int_to_ptr.vmem [resolvable:$true] %s52
      %58 = dma.hbm_to_vmem [thread:$0]  %s2, 256, %s53, [#allocation6], 128, 128, 8
    $region13: #{tpu_custom_call.1} parent=1 // pred_fallthru
      _
    // Predicated region
    $region14: #{tpu_custom_call.1} parent=1 // pred_check
      _
    $region15: #{tpu_custom_call.1} parent=1 // pred_check_branch
      %60 = sbr.rel (0) target = $region17
    $region16: #{tpu_custom_call.1} parent=1 // pred_region
      %s62 = ssub.s32 512, 512
      %63 = vsyncadd [#allocation9], %s62
      %s64 = sshll.u32 [#allocation8], 4
      %s65 = int_to_ptr.vmem [resolvable:$true] %s64
      %70 = dma.hbm_to_vmem [thread:$0]  %s3, 512, %s65, [#allocation9], 128, 128, 8
    $region17: #{tpu_custom_call.1} parent=1 // pred_fallthru
      _
    // Predicated region
    $region18: #{tpu_custom_call.1} parent=1 // pred_check
      _
    $region19: #{tpu_custom_call.1} parent=1 // pred_check_branch
      %72 = sbr.rel (0) target = $region21
    $region20: #{tpu_custom_call.1} parent=1 // pred_region
      %s74 = ssub.s32 512, 512
      %75 = vsyncadd [#allocation9], %s74
      %s76 = sshll.u32 [#allocation10], 4
      %s77 = int_to_ptr.vmem [resolvable:$true] %s76
      %82 = dma.hbm_to_vmem [thread:$0]  %s4, 512, %s77, [#allocation9], 128, 128, 8
    $region21: #{tpu_custom_call.1} parent=1 // pred_fallthru
      _
    // Predicated region
    $region22: #{tpu_custom_call.1} parent=1 // pred_check
      _
    $region23: #{tpu_custom_call.1} parent=1 // pred_check_branch
      %84 = sbr.rel (0) target = $region25
    $region24: #{tpu_custom_call.1} parent=1 // pred_region
      %s86 = ssub.s32 512, 512
      %87 = vsyncadd [#allocation12], %s86
      %s88 = sshll.u32 [#allocation11], 4
      %s89 = int_to_ptr.vmem [resolvable:$true] %s88
      %94 = dma.hbm_to_vmem [thread:$0]  %s5, 512, %s89, [#allocation12], 128, 128, 8
    $region25: #{tpu_custom_call.1} parent=1 // pred_fallthru
      _
    // Predicated region
    $region26: #{tpu_custom_call.1} parent=1 // pred_check
      _
    $region27: #{tpu_custom_call.1} parent=1 // pred_check_branch
      %96 = sbr.rel (0) target = $region29
    $region28: #{tpu_custom_call.1} parent=1 // pred_region
      _
    $region29: #{tpu_custom_call.1} parent=1 // pred_fallthru
      _
    // Predicated region
    $region30: #{tpu_custom_call.1} parent=1 // pred_check
      _
    $region31: #{tpu_custom_call.1} parent=1 // pred_check_branch
      %98 = sbr.rel (0) target = $region33
    $region32: #{tpu_custom_call.1} parent=1 // pred_region
      _
    $region33: #{tpu_custom_call.1} parent=1 // pred_fallthru
      _
    // Predicated region
    $region34: #{tpu_custom_call.1} parent=1 // pred_check
      _
    $region35: #{tpu_custom_call.1} parent=1 // pred_check_branch
      %100 = sbr.rel (0) target = $region37
    $region36: #{tpu_custom_call.1} parent=1 // pred_region
      _
    $region37: #{tpu_custom_call.1} parent=1 // pred_fallthru
      _
    // Predicated region
    $region38: #{tpu_custom_call.1} parent=1 // pred_check
      _
    $region39: #{tpu_custom_call.1} parent=1 // pred_check_branch
      %102 = sbr.rel (0) target = $region41
    $region40: #{tpu_custom_call.1} parent=1 // pred_region
      %103 = dma.done [#allocation3], 256
    $region41: #{tpu_custom_call.1} parent=1 // pred_fallthru
      _
    // Predicated region
    $region42: #{tpu_custom_call.1} parent=1 // pred_check
      _
    $region43: #{tpu_custom_call.1} parent=1 // pred_check_branch
      %105 = sbr.rel (0) target = $region45
    $region44: #{tpu_custom_call.1} parent=1 // pred_region
      %106 = dma.done [#allocation6], 256
    $region45: #{tpu_custom_call.1} parent=1 // pred_fallthru
      _
    // Predicated region
    $region46: #{tpu_custom_call.1} parent=1 // pred_check
      _
    $region47: #{tpu_custom_call.1} parent=1 // pred_check_branch
      %108 = sbr.rel (0) target = $region49
    $region48: #{tpu_custom_call.1} parent=1 // pred_region
      %109 = dma.done [#allocation6], 256
    $region49: #{tpu_custom_call.1} parent=1 // pred_fallthru
      _
    // Predicated region
    $region50: #{tpu_custom_call.1} parent=1 // pred_check
      _
    $region51: #{tpu_custom_call.1} parent=1 // pred_check_branch
      %111 = sbr.rel (0) target = $region53
    $region52: #{tpu_custom_call.1} parent=1 // pred_region
      %112 = dma.done [#allocation9], 512
    $region53: #{tpu_custom_call.1} parent=1 // pred_fallthru
      _
    // Predicated region
    $region54: #{tpu_custom_call.1} parent=1 // pred_check
      _
    $region55: #{tpu_custom_call.1} parent=1 // pred_check_branch
      %114 = sbr.rel (0) target = $region57
    $region56: #{tpu_custom_call.1} parent=1 // pred_region
      %115 = dma.done [#allocation9], 512
    $region57: #{tpu_custom_call.1} parent=1 // pred_fallthru
      _
    // Predicated region
    $region58: #{tpu_custom_call.1} parent=1 // pred_check
      _
    $region59: #{tpu_custom_call.1} parent=1 // pred_check_branch
      %117 = sbr.rel (0) target = $region61
    $region60: #{tpu_custom_call.1} parent=1 // pred_region
      %118 = dma.done [#allocation12], 512
    $region61: #{tpu_custom_call.1} parent=1 // pred_fallthru
      _
    %v119 = vld [vmem:[#allocation2] sm:$0xff]
    %v120 = vld [vmem:[#allocation2 + $0x8] sm:$0xff]
    %v121 = vld [vmem:[#allocation8] sm:$0xff]
    %v122 = vld [vmem:[#allocation8 + $0x8] sm:$0xff]
    %v123 = vld [vmem:[#allocation8 + $0x10] sm:$0xff]
    %v124 = vld [vmem:[#allocation8 + $0x18] sm:$0xff]
    %v125 = vld [vmem:[%s6] sm:$0x1]
    %v127 = vlaneseq
    %v128 = vshrl.u32 %v127, 7
    %v129 = vsub.s32 0, %v128
    %v130 = vrot.slane %v125, %v129
    %vm132 = vcmask 261120
    %v134 = vsel %vm132, %v119, 0
    %v137 = vsel %vm132, %v120, 0
    %139 = vmatprep.subr.mxu0 0.0
    %140 = vmatpush1.msra.mxu0 0.0
    %141 = vmatprep.subr.mxu0 0.0
    %142 = vmatpush1.msra.mxu0 0.0
    %143 = vmatprep.subr.mxu0 0.0
    %144 = vmatpush1.msra.mxu0 0.0
    %145 = vmatprep.subr.mxu0 0.0
    %146 = vmatpush1.msra.mxu0 0.0
    %147 = vmatprep.subr.mxu0 0.0
    %148 = vmatpush1.msra.mxu0 0.0
    %149 = vmatprep.subr.mxu0 0.0
    %150 = vmatpush1.msra.mxu0 0.0
    %151 = vmatprep.subr.mxu0 0.0
    %152 = vmatpush1.msra.mxu0 0.0
    %153 = vmatprep.subr.mxu0 0.0
    %154 = vmatpush1.msra.mxu0 0.0
    %155 = vmatprep.subr.mxu0 0.0
    %156 = vmatpush1.msra.mxu0 0.0
    %157 = vmatprep.subr.mxu0 0.0
    %158 = vmatpush1.msra.mxu0 0.0
    %159 = vmatprep.subr.mxu0 0.0
    %160 = vmatpush1.msra.mxu0 0.0
    %161 = vmatprep.subr.mxu0 0.0
    %162 = vmatpush1.msra.mxu0 0.0
    %163 = vmatprep.subr.mxu0 0.0
    %164 = vmatpush1.msra.mxu0 %v124
    %165 = vmatprep.subr.mxu0 0.0
    %166 = vmatpush1.msra.mxu0 %v123
    %167 = vmatprep.subr.mxu0 0.0
    %168 = vmatpush1.msra.mxu0 %v122
    %169 = vmatprep.subr.mxu0 0.0
    %170 = vmatpush1.msra.mxu0 %v121
    %171 = vmatprep.subr.mxu0 0.0
    %172 = vmatpush2.msra.mxu0 0.0
    %173 = vmatprep.subr.mxu0 0.0
    %174 = vmatpush2.msra.mxu0 0.0
    %175 = vmatprep.subr.mxu0 0.0
    %176 = vmatpush2.msra.mxu0 0.0
    %177 = vmatprep.subr.mxu0 0.0
    %178 = vmatpush2.msra.mxu0 0.0
    %179 = vmatprep.subr.mxu0 0.0
    %180 = vmatpush2.msra.mxu0 0.0
    %181 = vmatprep.subr.mxu0 0.0
    %182 = vmatpush2.msra.mxu0 0.0
    %183 = vmatprep.subr.mxu0 0.0
    %184 = vmatpush2.msra.mxu0 0.0
    %185 = vmatprep.subr.mxu0 0.0
    %186 = vmatpush2.msra.mxu0 0.0
    %187 = vmatprep.subr.mxu0 0.0
    %188 = vmatpush2.msra.mxu0 0.0
    %189 = vmatprep.subr.mxu0 0.0
    %190 = vmatpush2.msra.mxu0 0.0
    %191 = vmatprep.subr.mxu0 0.0
    %192 = vmatpush2.msra.mxu0 0.0
    %193 = vmatprep.subr.mxu0 0.0
    %194 = vmatpush2.msra.mxu0 0.0
    %195 = vmatprep.subr.mxu0 0.0
    %196 = vmatpush2.msra.mxu0 0.0
    %197 = vmatprep.subr.mxu0 0.0
    %198 = vmatpush2.msra.mxu0 0.0
    %199 = vmatprep.subr.mxu0 0.0
    %200 = vmatpush2.msra.mxu0 0.0
    %201 = vmatprep.subr.mxu0 0.0
    %202 = vmatpush2.msra.mxu0 0.0
    %203 = vmatprep.mubr.f32.mxu0 0.0
    %204 = vmatmul.mubr.f32.gmra.mxu0 %v134
    %v205 = vpop.f32.mrf.mxu0
    %v206 = vadd.f32 %v130, %v205
    %v207 = vpop.f32.mrf.mxu0
    %208 = vmatprep.mubr.f32.mxu0 0.0
    %209 = vmatmul.mubr.f32.gmra.mxu0 %v137
    %v210 = vpop.f32.mrf.mxu0
    %v211 = vadd.f32 %v130, %v210
    %v212 = vpop.f32.mrf.mxu0
    %213 = vdwg.mxu0
    %214 = vst.msk [vmem:[#allocation13] sm:$0xff] %vm132, %v206
    %215 = vst.msk [vmem:[#allocation13 + $0x8] sm:$0xff] %vm132, %v211
    %v216 = vld [vmem:[#allocation5] sm:$0xff]
    %v217 = vld [vmem:[#allocation5 + $0x8] sm:$0xff]
    %v218 = vld [vmem:[#allocation10] sm:$0xff]
    %v219 = vld [vmem:[#allocation10 + $0x8] sm:$0xff]
    %v220 = vld [vmem:[#allocation10 + $0x10] sm:$0xff]
    %v221 = vld [vmem:[#allocation10 + $0x18] sm:$0xff]
    %v222 = vld [vmem:[%s7] sm:$0x1]
    %v224 = vlaneseq
    %v225 = vshrl.u32 %v224, 7
    %v226 = vsub.s32 0, %v225
    %v227 = vrot.slane %v222, %v226
    %v230 = vsel %vm132, %v216, 0
    %v233 = vsel %vm132, %v217, 0
    %235 = vmatprep.subr.mxu0 0.0
    %236 = vmatpush1.msra.mxu0 0.0
    %237 = vmatprep.subr.mxu0 0.0
    %238 = vmatpush1.msra.mxu0 0.0
    %239 = vmatprep.subr.mxu0 0.0
    %240 = vmatpush1.msra.mxu0 0.0
    %241 = vmatprep.subr.mxu0 0.0
    %242 = vmatpush1.msra.mxu0 0.0
    %243 = vmatprep.subr.mxu0 0.0
    %244 = vmatpush1.msra.mxu0 0.0
    %245 = vmatprep.subr.mxu0 0.0
    %246 = vmatpush1.msra.mxu0 0.0
    %247 = vmatprep.subr.mxu0 0.0
    %248 = vmatpush1.msra.mxu0 0.0
    %249 = vmatprep.subr.mxu0 0.0
    %250 = vmatpush1.msra.mxu0 0.0
    %251 = vmatprep.subr.mxu0 0.0
    %252 = vmatpush1.msra.mxu0 0.0
    %253 = vmatprep.subr.mxu0 0.0
    %254 = vmatpush1.msra.mxu0 0.0
    %255 = vmatprep.subr.mxu0 0.0
    %256 = vmatpush1.msra.mxu0 0.0
    %257 = vmatprep.subr.mxu0 0.0
    %258 = vmatpush1.msra.mxu0 0.0
    %259 = vmatprep.subr.mxu0 0.0
    %260 = vmatpush1.msra.mxu0 %v221
    %261 = vmatprep.subr.mxu0 0.0
    %262 = vmatpush1.msra.mxu0 %v220
    %263 = vmatprep.subr.mxu0 0.0
    %264 = vmatpush1.msra.mxu0 %v219
    %265 = vmatprep.subr.mxu0 0.0
    %266 = vmatpush1.msra.mxu0 %v218
    %267 = vmatprep.subr.mxu0 0.0
    %268 = vmatpush2.msra.mxu0 0.0
    %269 = vmatprep.subr.mxu0 0.0
    %270 = vmatpush2.msra.mxu0 0.0
    %271 = vmatprep.subr.mxu0 0.0
    %272 = vmatpush2.msra.mxu0 0.0
    %273 = vmatprep.subr.mxu0 0.0
    %274 = vmatpush2.msra.mxu0 0.0
    %275 = vmatprep.subr.mxu0 0.0
    %276 = vmatpush2.msra.mxu0 0.0
    %277 = vmatprep.subr.mxu0 0.0
    %278 = vmatpush2.msra.mxu0 0.0
    %279 = vmatprep.subr.mxu0 0.0
    %280 = vmatpush2.msra.mxu0 0.0
    %281 = vmatprep.subr.mxu0 0.0
    %282 = vmatpush2.msra.mxu0 0.0
    %283 = vmatprep.subr.mxu0 0.0
    %284 = vmatpush2.msra.mxu0 0.0
    %285 = vmatprep.subr.mxu0 0.0
    %286 = vmatpush2.msra.mxu0 0.0
    %287 = vmatprep.subr.mxu0 0.0
    %288 = vmatpush2.msra.mxu0 0.0
    %289 = vmatprep.subr.mxu0 0.0
    %290 = vmatpush2.msra.mxu0 0.0
    %291 = vmatprep.subr.mxu0 0.0
    %292 = vmatpush2.msra.mxu0 0.0
    %293 = vmatprep.subr.mxu0 0.0
    %294 = vmatpush2.msra.mxu0 0.0
    %295 = vmatprep.subr.mxu0 0.0
    %296 = vmatpush2.msra.mxu0 0.0
    %297 = vmatprep.subr.mxu0 0.0
    %298 = vmatpush2.msra.mxu0 0.0
    %299 = vmatprep.mubr.f32.mxu0 0.0
    %300 = vmatmul.mubr.f32.gmra.mxu0 %v230
    %v301 = vpop.f32.mrf.mxu0
    %v302 = vadd.f32 %v227, %v301
    %v303 = vpop.f32.mrf.mxu0
    %304 = vmatprep.mubr.f32.mxu0 0.0
    %305 = vmatmul.mubr.f32.gmra.mxu0 %v233
    %v306 = vpop.f32.mrf.mxu0
    %v307 = vadd.f32 %v227, %v306
    %v308 = vpop.f32.mrf.mxu0
    %309 = vdwg.mxu0
    %310 = vst.msk [vmem:[#allocation14] sm:$0xff] %vm132, %v302
    %311 = vst.msk [vmem:[#allocation14 + $0x8] sm:$0xff] %vm132, %v307
    %v312 = vld [vmem:[#allocation7] sm:$0xff]
    %v313 = vld [vmem:[#allocation7 + $0x8] sm:$0xff]
    %v314 = vld [vmem:[#allocation11] sm:$0xff]
    %v315 = vld [vmem:[#allocation11 + $0x8] sm:$0xff]
    %v316 = vld [vmem:[#allocation11 + $0x10] sm:$0xff]
    %v317 = vld [vmem:[#allocation11 + $0x18] sm:$0xff]
    %v318 = vld [vmem:[%s8] sm:$0x1]
    %v320 = vlaneseq
    %v321 = vshrl.u32 %v320, 7
    %v322 = vsub.s32 0, %v321
    %v323 = vrot.slane %v318, %v322
    %v326 = vsel %vm132, %v312, 0
    %v329 = vsel %vm132, %v313, 0
    %331 = vmatprep.subr.mxu0 0.0
    %332 = vmatpush1.msra.mxu0 0.0
    %333 = vmatprep.subr.mxu0 0.0
    %334 = vmatpush1.msra.mxu0 0.0
    %335 = vmatprep.subr.mxu0 0.0
    %336 = vmatpush1.msra.mxu0 0.0
    %337 = vmatprep.subr.mxu0 0.0
    %338 = vmatpush1.msra.mxu0 0.0
    %339 = vmatprep.subr.mxu0 0.0
    %340 = vmatpush1.msra.mxu0 0.0
    %341 = vmatprep.subr.mxu0 0.0
    %342 = vmatpush1.msra.mxu0 0.0
    %343 = vmatprep.subr.mxu0 0.0
    %344 = vmatpush1.msra.mxu0 0.0
    %345 = vmatprep.subr.mxu0 0.0
    %346 = vmatpush1.msra.mxu0 0.0
    %347 = vmatprep.subr.mxu0 0.0
    %348 = vmatpush1.msra.mxu0 0.0
    %349 = vmatprep.subr.mxu0 0.0
    %350 = vmatpush1.msra.mxu0 0.0
    %351 = vmatprep.subr.mxu0 0.0
    %352 = vmatpush1.msra.mxu0 0.0
    %353 = vmatprep.subr.mxu0 0.0
    %354 = vmatpush1.msra.mxu0 0.0
    %355 = vmatprep.subr.mxu0 0.0
    %356 = vmatpush1.msra.mxu0 %v317
    %357 = vmatprep.subr.mxu0 0.0
    %358 = vmatpush1.msra.mxu0 %v316
    %359 = vmatprep.subr.mxu0 0.0
    %360 = vmatpush1.msra.mxu0 %v315
    %361 = vmatprep.subr.mxu0 0.0
    %362 = vmatpush1.msra.mxu0 %v314
    %363 = vmatprep.subr.mxu0 0.0
    %364 = vmatpush2.msra.mxu0 0.0
    %365 = vmatprep.subr.mxu0 0.0
    %366 = vmatpush2.msra.mxu0 0.0
    %367 = vmatprep.subr.mxu0 0.0
    %368 = vmatpush2.msra.mxu0 0.0
    %369 = vmatprep.subr.mxu0 0.0
    %370 = vmatpush2.msra.mxu0 0.0
    %371 = vmatprep.subr.mxu0 0.0
    %372 = vmatpush2.msra.mxu0 0.0
    %373 = vmatprep.subr.mxu0 0.0
    %374 = vmatpush2.msra.mxu0 0.0
    %375 = vmatprep.subr.mxu0 0.0
    %376 = vmatpush2.msra.mxu0 0.0
    %377 = vmatprep.subr.mxu0 0.0
    %378 = vmatpush2.msra.mxu0 0.0
    %379 = vmatprep.subr.mxu0 0.0
    %380 = vmatpush2.msra.mxu0 0.0
    %381 = vmatprep.subr.mxu0 0.0
    %382 = vmatpush2.msra.mxu0 0.0
    %383 = vmatprep.subr.mxu0 0.0
    %384 = vmatpush2.msra.mxu0 0.0
    %385 = vmatprep.subr.mxu0 0.0
    %386 = vmatpush2.msra.mxu0 0.0
    %387 = vmatprep.subr.mxu0 0.0
    %388 = vmatpush2.msra.mxu0 0.0
    %389 = vmatprep.subr.mxu0 0.0
    %390 = vmatpush2.msra.mxu0 0.0
    %391 = vmatprep.subr.mxu0 0.0
    %392 = vmatpush2.msra.mxu0 0.0
    %393 = vmatprep.subr.mxu0 0.0
    %394 = vmatpush2.msra.mxu0 0.0
    %395 = vmatprep.mubr.f32.mxu0 0.0
    %396 = vmatmul.mubr.f32.gmra.mxu0 %v326
    %v397 = vpop.f32.mrf.mxu0
    %v398 = vadd.f32 %v323, %v397
    %v399 = vpop.f32.mrf.mxu0
    %400 = vmatprep.mubr.f32.mxu0 0.0
    %401 = vmatmul.mubr.f32.gmra.mxu0 %v329
    %v402 = vpop.f32.mrf.mxu0
    %v403 = vadd.f32 %v323, %v402
    %v404 = vpop.f32.mrf.mxu0
    %405 = vdwg.mxu0
    %406 = vst.msk [vmem:[#allocation16] sm:$0xff] %vm132, %v398
    %407 = vst.msk [vmem:[#allocation16 + $0x8] sm:$0xff] %vm132, %v403
    // Predicated region
    $region62: #{tpu_custom_call.1} parent=1 // pred_check
      _
    $region63: #{tpu_custom_call.1} parent=1 // pred_check_branch
      %409 = sbr.rel (0) target = $region65
    $region64: #{tpu_custom_call.1} parent=1 // pred_region
      %s411 = ssub.s32 256, 256
      %412 = vsyncadd [#allocation4], %s411
      %s413 = sshll.u32 [#allocation13], 4
      %s414 = int_to_ptr.vmem [resolvable:$true] %s413
      %419 = dma.vmem_to_hbm [thread:$0]  %s414, 256, %s9, [#allocation4], 128, 128, 8
    $region65: #{tpu_custom_call.1} parent=1 // pred_fallthru
      _
    // Predicated region
    $region66: #{tpu_custom_call.1} parent=1 // pred_check
      _
    $region67: #{tpu_custom_call.1} parent=1 // pred_check_branch
      %421 = sbr.rel (0) target = $region69
    $region68: #{tpu_custom_call.1} parent=1 // pred_region
      %s423 = ssub.s32 256, 256
      %424 = vsyncadd [#allocation15], %s423
      %s425 = sshll.u32 [#allocation14], 4
      %s426 = int_to_ptr.vmem [resolvable:$true] %s425
      %431 = dma.vmem_to_hbm [thread:$0]  %s426, 256, %s10, [#allocation15], 128, 128, 8
    $region69: #{tpu_custom_call.1} parent=1 // pred_fallthru
      _
    // Predicated region
    $region70: #{tpu_custom_call.1} parent=1 // pred_check
      _
    $region71: #{tpu_custom_call.1} parent=1 // pred_check_branch
      %433 = sbr.rel (0) target = $region73
    $region72: #{tpu_custom_call.1} parent=1 // pred_region
      %s435 = ssub.s32 256, 256
      %436 = vsyncadd [#allocation15], %s435
      %s437 = sshll.u32 [#allocation16], 4
      %s438 = int_to_ptr.vmem [resolvable:$true] %s437
      %443 = dma.vmem_to_hbm [thread:$0]  %s438, 256, %s11, [#allocation15], 128, 128, 8
    $region73: #{tpu_custom_call.1} parent=1 // pred_fallthru
      _
    // Predicated region
    $region74: #{tpu_custom_call.1} parent=1 // pred_check
      _
    $region75: #{tpu_custom_call.1} parent=1 // pred_check_branch
      %445 = sbr.rel (0) target = $region77
    $region76: #{tpu_custom_call.1} parent=1 // pred_region
      %446 = dma.done [#allocation4], 256
    $region77: #{tpu_custom_call.1} parent=1 // pred_fallthru
      _
    // Predicated region
    $region78: #{tpu_custom_call.1} parent=1 // pred_check
      _
    $region79: #{tpu_custom_call.1} parent=1 // pred_check_branch
      %448 = sbr.rel (0) target = $region81
    $region80: #{tpu_custom_call.1} parent=1 // pred_region
      %449 = dma.done [#allocation15], 256
    $region81: #{tpu_custom_call.1} parent=1 // pred_fallthru
      _
    // Predicated region
    $region82: #{tpu_custom_call.1} parent=1 // pred_check
      _
    $region83: #{tpu_custom_call.1} parent=1 // pred_check_branch
      %451 = sbr.rel (0) target = $region85
    $region84: #{tpu_custom_call.1} parent=1 // pred_region
      %452 = dma.done [#allocation15], 256
    $region85: #{tpu_custom_call.1} parent=1 // pred_fallthru
      _
    %453 = vsyncpa [#allocation3], 1
    %454 = vsyncpa [#allocation6], 1
    %455 = vsyncpa [#allocation9], 1
    %456 = vsyncpa [#allocation12], 1
    %457 = vsyncpa [#allocation4], 1
    %458 = vsyncpa [#allocation15], 1

</llo_original>
